<compile_context>
chip_gen: v6e
topology: v6e:2x2x1
jax: 0.10.0
libtpu: 0.0.40
codegen_flags: <defaults>
</compile_context>

<pallas_src>
import jax
import jax.numpy as jnp
from jax.experimental import pallas as pl
from jax.experimental.pallas import tpu as pltpu


def _round_up(a, b):
    return -(-a // b) * b


def masked_convolution(x_nchw, weight_oihw, bias, mask, dilation=1,
                       batch_block=None, use_bf16_matmul=False):
    """x_nchw: (N, Cin, H, W); weight_oihw: (Cout, Cin, KH, KW); bias: (Cout,);
    mask: (KH, KW). Returns (N, Cout, H, W)."""
    # TODO(synk): dilation > 1 is not implemented in the kernel (module default is 1).
    assert dilation == 1
    N, Cin, H, W = x_nchw.shape
    Cout, Cin_w, KH, KW = weight_oihw.shape
    assert Cin_w == Cin
    # Odd kernels give the symmetric (k-1)//2 padding the module relies on.
    assert KH % 2 == 1 and KW % 2 == 1, "only odd kernel sizes supported"
    ph, pw = (KH - 1) // 2, (KW - 1) // 2
    Hp, Wp = H + 2 * ph, W + 2 * pw
    HpWp = Hp * Wp

    out_dtype = x_nchw.dtype
    # bf16 MXU operands halve operand DMA bytes (accumulation stays f32); only
    # worth it once the kernel is DMA/MXU bound, so default off.
    compute_dtype = jnp.bfloat16 if use_bf16_matmul else x_nchw.dtype
    itemsize = int(jnp.dtype(compute_dtype).itemsize)
    sub = 8 * (4 // itemsize)            # sublane tile: 8 (f32) / 16 (bf16)
    Cin_pad = _round_up(Cin, sub)        # sublane-aligned per-tap row group

    # Fold several images per grid step; keep >= 2 steps when possible (v7x 2 TCs).
    if batch_block is None:
        batch_block = max(1, min(8, -(-N // 2)))
    Nb = max(1, min(batch_block, N))
    G = -(-N // Nb)
    Np = G * Nb

    L = Nb * HpWp
    L_pad = _round_up(L, 128)            # lane-dense, 128-aligned matmul width
    Kc = KH * KW * Cin_pad               # contraction length (zero-padded taps)

    # ---- Grid-invariant prep (fused XLA passes, not per grid step) -------------
    # Input: zero-pad batch (ragged last group), channels (sublane tile) and the
    # spatial halo, then flatten to a per-group lane-dense slab:
    #   x_prep[g, ci, n*Hp*Wp + a*Wp + b] = xpad[g*Nb + n, ci, a, b]
    xp = jnp.pad(x_nchw.astype(compute_dtype),
                 ((0, Np - N), (0, Cin_pad - Cin), (ph, ph), (pw, pw)))
    x_prep = xp.reshape(G, Nb, Cin_pad, HpWp)
    x_prep = jnp.transpose(x_prep, (0, 2, 1, 3)).reshape(G, Cin_pad, L)
    x_prep = jnp.pad(x_prep, ((0, 0), (0, 0), (0, L_pad - L)))

    # Weights: mask once (grid-invariant), pad Cin to the sublane tile, reorder to
    # tap-major (kh, kw, ci) and flatten the contraction axis.
    w_masked = weight_oihw * mask[None, None].astype(weight_oihw.dtype)
    w_p = jnp.pad(w_masked, ((0, 0), (0, Cin_pad - Cin), (0, 0), (0, 0)))
    w2 = jnp.transpose(w_p, (0, 2, 3, 1)).reshape(Cout, Kc).astype(compute_dtype)
    b2 = bias.astype(jnp.float32).reshape(Cout, 1)

    def kernel(x_ref, w_ref, b_ref, o_ref, col_ref):
        # x_ref:   (Cin_pad, L_pad)  flat zero-padded slab holding Nb images
        # w_ref:   (Cout, Kc)        masked weights, tap-major ((kh,kw), ci)
        # b_ref:   (Cout, 1)         bias, f32
        # o_ref:   (Cout, L_pad)     lane-dense output slab
        # col_ref: (Kc, L_pad)       im2col scratch (compute dtype)

        # Zero the scratch once: per step only lanes [0, L_pad - d) of each tap's
        # row group are rewritten, and the never-rewritten tail lanes only feed
        # output columns that the wrapper discards; the zero keeps them
        # deterministic.  Scratch persists across grid steps.
        @pl.when(pl.program_id(0) == 0)
        def _():
            col_ref[...] = jnp.zeros_like(col_ref)

        # im2col: tap (kh, kw) is the flat slab lane-shifted left by d = kh*Wp + kw
        # (halo zeros absorb the window boundaries), stored at a sublane-aligned
        # row offset.  One shifted load + one full-row store per tap; no per-tap
        # (Cin, H, W) -> (Cin, H*W) repacks.
        # (pltpu.roll(x_ref[...], L_pad - d, axis=1) is the XLU-explicit form.)
        for kh in range(KH):
            for kw in range(KW):
                d = kh * Wp + kw
                r = (kh * KW + kw) * Cin_pad
                if d == 0:
                    col_ref[r:r + Cin_pad, :] = x_ref[...]
                else:
                    col_ref[r:r + Cin_pad, : L_pad - d] = x_ref[:, d:]

        # One MXU matmul over all taps/channels/images, f32 accumulation.
        acc = jnp.dot(w_ref[...], col_ref[...],
                      preferred_element_type=jnp.float32)     # (Cout, L_pad)
        acc = acc + b_ref[...].astype(jnp.float32)            # lane-broadcast bias
        o_ref[...] = acc.astype(o_ref.dtype)

    flops = 2 * N * H * W * KH * KW * Cin * Cout
    bytes_accessed = (int(x_prep.size) * itemsize
                      + int(w2.size) * itemsize
                      + int(b2.size) * 4
                      + G * Cout * L_pad * int(jnp.dtype(out_dtype).itemsize))

    # TODO(synk): for large H*W / channel counts, additionally tile the lane axis
    # (block L_pad) and Cout: 256-wide Cout tiles on v6e/v7x (2x256x256 MXU), 128 on
    # v5e; budget double-buffered input/output blocks + col for v7x's 64 MiB
    # physical VMEM, and raise vmem_limit_bytes explicitly on v5e/v6e (scoped
    # defaults 16/32 MiB) instead of over-tiling.
    out = pl.pallas_call(
        kernel,
        out_shape=jax.ShapeDtypeStruct((G, Cout, L_pad), out_dtype),
        grid=(G,),
        in_specs=[
            pl.BlockSpec((None, Cin_pad, L_pad), lambda g: (g, 0, 0)),
            pl.BlockSpec((Cout, Kc), lambda g: (0, 0)),
            pl.BlockSpec((Cout, 1), lambda g: (0, 0)),
        ],
        out_specs=pl.BlockSpec((None, Cout, L_pad), lambda g: (g, 0, 0)),
        scratch_shapes=[
            pltpu.VMEM((Kc, L_pad), compute_dtype),    # im2col matrix
        ],
        compiler_params=pltpu.CompilerParams(
            dimension_semantics=("parallel",)),
        cost_estimate=pl.CostEstimate(
            flops=flops, transcendentals=0, bytes_accessed=bytes_accessed),
    )(x_prep, w2, b2)

    # Layout plumbing (one fused XLA pass): drop pad columns, un-fold the batch,
    # return NCHW.
    out = out[:, :, :L].reshape(G, Cout, Nb, Hp, Wp)[:, :, :, :H, :W]
    out = jnp.transpose(out, (0, 2, 1, 3, 4)).reshape(Np, Cout, H, W)
    return out[:N]


if __name__ == "__main__":
    key = jax.random.PRNGKey(0)
    k1, k2, k3 = jax.random.split(key, 3)

    N, Cin, Cout, H, W, K = 2, 4, 8, 16, 16, 3

    x = jax.random.normal(k1, (N, Cin, H, W), jnp.float32)

    # Deterministic parameter init mimicking nn.Conv2d default: U(-b, b),
    # b = 1/sqrt(Cin * KH * KW).
    fan = Cin * K * K
    bound = 1.0 / (fan ** 0.5)
    weight = jax.random.uniform(k2, (Cout, Cin, K, K), jnp.float32, -bound, bound)
    bias = jax.random.uniform(k3, (Cout,), jnp.float32, -bound, bound)

    # PixelCNN "type A" mask: zero at the center pixel and everything after it.
    mask = jnp.ones((K, K), jnp.float32)
    mask = mask.at[K // 2, K // 2:].set(0.0)
    mask = mask.at[K // 2 + 1:, :].set(0.0)

    # Reference: XLA conv with masked weights (same semantics as the PyTorch module).
    w_masked_ref = weight * mask[None, None]
    ref = jax.lax.conv_general_dilated(
        x, w_masked_ref, window_strides=(1, 1),
        padding=((K // 2, K // 2), (K // 2, K // 2)),
        dimension_numbers=("NCHW", "OIHW", "NCHW"))
    ref = ref + bias[None, :, None, None]

    # Default path: Nb=1 per step, 2 "parallel" grid steps.
    out = masked_convolution(x, weight, bias, mask)
    out = jax.block_until_ready(out)
    assert out.shape == (N, Cout, H, W)
    assert jnp.allclose(out, ref, atol=1e-4, rtol=1e-4), "mismatch vs reference conv"

    # Batch-folded path: both images in one grid step / one MXU matmul.
    out_folded = masked_convolution(x, weight, bias, mask, batch_block=2)
    out_folded = jax.block_until_ready(out_folded)
    assert out_folded.shape == (N, Cout, H, W)
    assert jnp.allclose(out_folded, ref, atol=1e-4, rtol=1e-4), "folded path mismatch"

    print("KERNEL_OK")
</pallas_src>

<mosaic_0001>
module attributes {stable_mosaic.version = 11 : i64} {
  func.func @kernel(%arg0: i32, %arg1: memref<1x8x384xf32, #tpu.memory_space<vmem>>, %arg2: memref<8x72xf32, #tpu.memory_space<vmem>>, %arg3: memref<8x1xf32, #tpu.memory_space<vmem>>, %arg4: memref<1x8x384xf32, #tpu.memory_space<vmem>>, %arg5: memref<72x384xf32, #tpu.memory_space<vmem>>) attributes {dimension_semantics = [#tpu.dimension_semantics<parallel>], iteration_bounds = array<i64: 2>, scalar_prefetch = 0 : i64, scratch_operands = 1 : i64, tpu.core_type = #tpu.core_type<tc>, window_params = [{transform_indices = @transform_0, window_bounds = array<i64: 1, 8, 384>}, {pipeline_mode = #tpu.pipeline_mode<synchronous>, transform_indices = @transform_1, window_bounds = array<i64: 8, 72>}, {pipeline_mode = #tpu.pipeline_mode<synchronous>, transform_indices = @transform_2, window_bounds = array<i64: 8, 1>}, {transform_indices = @transform_3, window_bounds = array<i64: 1, 8, 384>}]} {
    %c0_i32 = arith.constant 0 : i32
    %0 = arith.cmpi eq, %arg0, %c0_i32 : i32
    %1 = arith.extui %0 : i1 to i32
    %c0_i32_0 = arith.constant 0 : i32
    %2 = arith.cmpi ne, %1, %c0_i32_0 : i32
    scf.if %2 {
      %cst_38 = arith.constant 0.000000e+00 : f32
      %39 = vector.broadcast %cst_38 : f32 to vector<72x384xf32>
      %c0_39 = arith.constant 0 : index
      %c0_40 = arith.constant 0 : index
      %40 = vector.load %arg5[%c0_39, %c0_40] : memref<72x384xf32, #tpu.memory_space<vmem>>, vector<72x384xf32>
      tpu.vector_store %arg5[%c0_39, %c0_40], %39 {strides = array<i32>} : memref<72x384xf32, #tpu.memory_space<vmem>>, vector<72x384xf32>,
    } else {
    }
    %c0 = arith.constant 0 : index
    %c0_1 = arith.constant 0 : index
    %c0_2 = arith.constant 0 : index
    %3 = vector.load %arg1[%c0, %c0_1, %c0_2] : memref<1x8x384xf32, #tpu.memory_space<vmem>>, vector<1x8x384xf32>
    %4 = vector.shape_cast %3 : vector<1x8x384xf32> to vector<8x384xf32>
    %c0_3 = arith.constant 0 : index
    %c0_4 = arith.constant 0 : index
    %5 = vector.load %arg5[%c0_3, %c0_4] : memref<72x384xf32, #tpu.memory_space<vmem>>, vector<8x384xf32>
    tpu.vector_store %arg5[%c0_3, %c0_4], %4 {strides = array<i32>} : memref<72x384xf32, #tpu.memory_space<vmem>>, vector<8x384xf32>,
    %c0_5 = arith.constant 0 : index
    %c0_6 = arith.constant 0 : index
    %c1 = arith.constant 1 : index
    %6 = vector.load %arg1[%c0_5, %c0_6, %c1] : memref<1x8x384xf32, #tpu.memory_space<vmem>>, vector<1x8x383xf32>
    %7 = vector.shape_cast %6 : vector<1x8x383xf32> to vector<8x383xf32>
    %c8 = arith.constant 8 : index
    %c0_7 = arith.constant 0 : index
    %8 = vector.load %arg5[%c8, %c0_7] : memref<72x384xf32, #tpu.memory_space<vmem>>, vector<8x383xf32>
    tpu.vector_store %arg5[%c8, %c0_7], %7 {strides = array<i32>} : memref<72x384xf32, #tpu.memory_space<vmem>>, vector<8x383xf32>,
    %c0_8 = arith.constant 0 : index
    %c0_9 = arith.constant 0 : index
    %c2 = arith.constant 2 : index
    %9 = vector.load %arg1[%c0_8, %c0_9, %c2] : memref<1x8x384xf32, #tpu.memory_space<vmem>>, vector<1x8x382xf32>
    %10 = vector.shape_cast %9 : vector<1x8x382xf32> to vector<8x382xf32>
    %c16 = arith.constant 16 : index
    %c0_10 = arith.constant 0 : index
    %11 = vector.load %arg5[%c16, %c0_10] : memref<72x384xf32, #tpu.memory_space<vmem>>, vector<8x382xf32>
    tpu.vector_store %arg5[%c16, %c0_10], %10 {strides = array<i32>} : memref<72x384xf32, #tpu.memory_space<vmem>>, vector<8x382xf32>,
    %c0_11 = arith.constant 0 : index
    %c0_12 = arith.constant 0 : index
    %c18 = arith.constant 18 : index
    %12 = vector.load %arg1[%c0_11, %c0_12, %c18] : memref<1x8x384xf32, #tpu.memory_space<vmem>>, vector<1x8x366xf32>
    %13 = vector.shape_cast %12 : vector<1x8x366xf32> to vector<8x366xf32>
    %c24 = arith.constant 24 : index
    %c0_13 = arith.constant 0 : index
    %14 = vector.load %arg5[%c24, %c0_13] : memref<72x384xf32, #tpu.memory_space<vmem>>, vector<8x366xf32>
    tpu.vector_store %arg5[%c24, %c0_13], %13 {strides = array<i32>} : memref<72x384xf32, #tpu.memory_space<vmem>>, vector<8x366xf32>,
    %c0_14 = arith.constant 0 : index
    %c0_15 = arith.constant 0 : index
    %c19 = arith.constant 19 : index
    %15 = vector.load %arg1[%c0_14, %c0_15, %c19] : memref<1x8x384xf32, #tpu.memory_space<vmem>>, vector<1x8x365xf32>
    %16 = vector.shape_cast %15 : vector<1x8x365xf32> to vector<8x365xf32>
    %c32 = arith.constant 32 : index
    %c0_16 = arith.constant 0 : index
    %17 = vector.load %arg5[%c32, %c0_16] : memref<72x384xf32, #tpu.memory_space<vmem>>, vector<8x365xf32>
    tpu.vector_store %arg5[%c32, %c0_16], %16 {strides = array<i32>} : memref<72x384xf32, #tpu.memory_space<vmem>>, vector<8x365xf32>,
    %c0_17 = arith.constant 0 : index
    %c0_18 = arith.constant 0 : index
    %c20 = arith.constant 20 : index
    %18 = vector.load %arg1[%c0_17, %c0_18, %c20] : memref<1x8x384xf32, #tpu.memory_space<vmem>>, vector<1x8x364xf32>
    %19 = vector.shape_cast %18 : vector<1x8x364xf32> to vector<8x364xf32>
    %c40 = arith.constant 40 : index
    %c0_19 = arith.constant 0 : index
    %20 = vector.load %arg5[%c40, %c0_19] : memref<72x384xf32, #tpu.memory_space<vmem>>, vector<8x364xf32>
    tpu.vector_store %arg5[%c40, %c0_19], %19 {strides = array<i32>} : memref<72x384xf32, #tpu.memory_space<vmem>>, vector<8x364xf32>,
    %c0_20 = arith.constant 0 : index
    %c0_21 = arith.constant 0 : index
    %c36 = arith.constant 36 : index
    %21 = vector.load %arg1[%c0_20, %c0_21, %c36] : memref<1x8x384xf32, #tpu.memory_space<vmem>>, vector<1x8x348xf32>
    %22 = vector.shape_cast %21 : vector<1x8x348xf32> to vector<8x348xf32>
    %c48 = arith.constant 48 : index
    %c0_22 = arith.constant 0 : index
    %23 = vector.load %arg5[%c48, %c0_22] : memref<72x384xf32, #tpu.memory_space<vmem>>, vector<8x348xf32>
    tpu.vector_store %arg5[%c48, %c0_22], %22 {strides = array<i32>} : memref<72x384xf32, #tpu.memory_space<vmem>>, vector<8x348xf32>,
    %c0_23 = arith.constant 0 : index
    %c0_24 = arith.constant 0 : index
    %c37 = arith.constant 37 : index
    %24 = vector.load %arg1[%c0_23, %c0_24, %c37] : memref<1x8x384xf32, #tpu.memory_space<vmem>>, vector<1x8x347xf32>
    %25 = vector.shape_cast %24 : vector<1x8x347xf32> to vector<8x347xf32>
    %c56 = arith.constant 56 : index
    %c0_25 = arith.constant 0 : index
    %26 = vector.load %arg5[%c56, %c0_25] : memref<72x384xf32, #tpu.memory_space<vmem>>, vector<8x347xf32>
    tpu.vector_store %arg5[%c56, %c0_25], %25 {strides = array<i32>} : memref<72x384xf32, #tpu.memory_space<vmem>>, vector<8x347xf32>,
    %c0_26 = arith.constant 0 : index
    %c0_27 = arith.constant 0 : index
    %c38 = arith.constant 38 : index
    %27 = vector.load %arg1[%c0_26, %c0_27, %c38] : memref<1x8x384xf32, #tpu.memory_space<vmem>>, vector<1x8x346xf32>
    %28 = vector.shape_cast %27 : vector<1x8x346xf32> to vector<8x346xf32>
    %c64 = arith.constant 64 : index
    %c0_28 = arith.constant 0 : index
    %29 = vector.load %arg5[%c64, %c0_28] : memref<72x384xf32, #tpu.memory_space<vmem>>, vector<8x346xf32>
    tpu.vector_store %arg5[%c64, %c0_28], %28 {strides = array<i32>} : memref<72x384xf32, #tpu.memory_space<vmem>>, vector<8x346xf32>,
    %c0_29 = arith.constant 0 : index
    %c0_30 = arith.constant 0 : index
    %30 = vector.load %arg2[%c0_29, %c0_30] : memref<8x72xf32, #tpu.memory_space<vmem>>, vector<8x72xf32>
    %c0_31 = arith.constant 0 : index
    %c0_32 = arith.constant 0 : index
    %31 = vector.load %arg5[%c0_31, %c0_32] : memref<72x384xf32, #tpu.memory_space<vmem>>, vector<72x384xf32>
    %cst = arith.constant dense<0.000000e+00> : vector<8x384xf32>
    %32 = tpu.matmul %30, %31, %cst {dimension_numbers = #tpu.dot_dimension_numbers<[1], [0], [0], [1], [0, 0, 1, 1], [], []>} : vector<8x72xf32>, vector<72x384xf32>, vector<8x384xf32> -> vector<8x384xf32>
    %c0_33 = arith.constant 0 : index
    %c0_34 = arith.constant 0 : index
    %33 = vector.load %arg3[%c0_33, %c0_34] : memref<8x1xf32, #tpu.memory_space<vmem>>, vector<8x1xf32>
    %34 = vector.broadcast %33 : vector<8x1xf32> to vector<8x384xf32>
    %35 = arith.addf %32, %34 : vector<8x384xf32>
    %c0_35 = arith.constant 0 : index
    %c0_36 = arith.constant 0 : index
    %c0_37 = arith.constant 0 : index
    %36 = vector.load %arg4[%c0_35, %c0_36, %c0_37] : memref<1x8x384xf32, #tpu.memory_space<vmem>>, vector<1x8x384xf32>
    %37 = vector.shape_cast %36 : vector<1x8x384xf32> to vector<8x384xf32>
    %38 = vector.shape_cast %35 : vector<8x384xf32> to vector<1x8x384xf32>
    tpu.vector_store %arg4[%c0_35, %c0_36, %c0_37], %38 {strides = array<i32>} : memref<1x8x384xf32, #tpu.memory_space<vmem>>, vector<1x8x384xf32>,
    return
  }
  func.func @transform_0(%arg0: i32) -> (i32, i32, i32) {
    %c0_i32 = arith.constant 0 : i32
    %c0_i32_0 = arith.constant 0 : i32
    %c0_i32_1 = arith.constant 0 : i32
    return %arg0, %c0_i32, %c0_i32_0 : i32, i32, i32
  }
  func.func @transform_1(%arg0: i32) -> (i32, i32) {
    %c0_i32 = arith.constant 0 : i32
    %c0_i32_0 = arith.constant 0 : i32
    %c0_i32_1 = arith.constant 0 : i32
    return %c0_i32, %c0_i32_0 : i32, i32
  }
  func.func @transform_2(%arg0: i32) -> (i32, i32) {
    %c0_i32 = arith.constant 0 : i32
    %c0_i32_0 = arith.constant 0 : i32
    %c0_i32_1 = arith.constant 0 : i32
    return %c0_i32, %c0_i32_0 : i32, i32
  }
  func.func @transform_3(%arg0: i32) -> (i32, i32, i32) {
    %c0_i32 = arith.constant 0 : i32
    %c0_i32_0 = arith.constant 0 : i32
    %c0_i32_1 = arith.constant 0 : i32
    return %arg0, %c0_i32, %c0_i32_0 : i32, i32, i32
  }
}

</mosaic_0001>

<llo_original>
// kernel: tpu_custom_call.1
$region0: #{tpu_custom_call.1}
  #allocation0 [shape = 'u32[]', space=smem, size = 0x4, offset = 0x4, fixed_abs, tag = 'smem constant byte address 0x4 - core index']
  #allocation1 [shape = 'u32[144,128]{1,0:T(1,128)}', space=vmem, size = 0x12000, scoped, tag = 'internal scratch']
  #allocation2 [shape = 'f32[72,384]{1,0:T(8,128)}', space=vmem, size = 0x1b000, scoped, tag = 'scratch operand']
  %s0 = inlined_call_operand.hbm [shape: f32[2,8,384], index: 0, kind: input, shape index: {}]
  %s1 = inlined_call_operand.vmem [shape: f32[8,72], index: 1, kind: input, shape index: {}]
  %s2 = inlined_call_operand.vmem [shape: f32[8,1], index: 2, kind: input, shape index: {}]
  %s3 = inlined_call_operand.hbm [shape: f32[2,8,384], index: 3, kind: output, shape index: {}]
  %s4 = sld [smem:[#allocation0]]
  $region53: #{tpu_custom_call.1} parent=0
    _
  %s6 = ssub.s32 1, %s4
  %s7 = scalar_select 0, %s6, %s4
  $region1: #{tpu_custom_call.1} parent=0
    #allocation3 [shape = 'u8[24576]{0}', space=vmem, size = 0x6000, scoped, tag = 'input window, operand 0']
    #allocation4 [shape = 's32[2]{0}', space=sflag, size = 0x8, scoped, tag = 'scoped memory for tpu_custom_call.1']
    #allocation5 [shape = 's32[2]{0}', space=sflag, size = 0x8, scoped, tag = 'scoped memory for tpu_custom_call.1']
    #allocation6 [shape = 'u8[24576]{0}', space=vmem, size = 0x6000, scoped, tag = 'output window, operand 0']
    %8 = vsyncpa [#allocation4], 0
    %s9 = scalar_lea.sflag [#allocation4], 1
    %10 = vsyncpa %s9, 0
    %11 = vsyncpa [#allocation5], 0
    %s12 = scalar_lea.sflag [#allocation5], 1
    %13 = vsyncpa %s12, 0
    loop: start=0, step=1, limit=4
    $region2: #{tpu_custom_call.1} parent=1 // loop_pre_header
      _
    $region3: #{tpu_custom_call.1} parent=1 // loop_header
      %s15 = sphi 0, %s19
      %p16 = scmp.ge.s32.totalorder %s15, 4
      %s25 = sphi 0, %s27
      %s28 = sphi 0, %s25
      %s29 = sphi 0, %s28
      %s45 = sphi 0, %s29
      %s49 = sphi 0, %s49
      %s51 = sphi 0, %s49
      %s52 = sphi 0, %s51
      %s66 = sphi 0, %s52
      %s70 = sphi 0, %s70
      %s72 = sphi 0, %s70
      %s73 = sphi 0, %s72
      %s87 = sphi 0, %s73
      %s93 = sphi 0, %s95
      %s96 = sphi 0, %s93
      %s97 = sphi 0, %s96
      %s113 = sphi 0, %s97
    $region4: #{tpu_custom_call.1} parent=1 // loop_header_branch
      %18 = sbr.rel (%p16) target = $region8
    $region5: #{tpu_custom_call.1} parent=1 // loop_body
      %s20 = ssub.s32 %s15, 1
      %s21 = ssub.s32 %s15, 2
      %s22 = sadd.s32 %s15, 1
      %s23 = ssub.s32 %s15, %s22
      %p24 = scmp.eq.s32.totalorder %s23, 0
      %s26 = sadd.s32 %s25, 1
      %s27 = scalar_select %p24, %s25, %s26
      %p30 = pneg %p24
      %p31 = scmp.eq.s32.totalorder %s15, 1
      %p32 = por %p30, %p31
      %p33 = scmp.ne.s32.totalorder %s25, %s28
      %p34 = scmp.eq.s32.totalorder %s15, 0
      %p35 = por %p33, %p34
      %p36 = scmp.ne.s32.totalorder %s25, %s28
      %p37 = scmp.eq.s32.totalorder %s20, 1
      %p38 = por %p36, %p37
      %p39 = scmp.ne.s32.totalorder %s28, %s29
      %p40 = scmp.eq.s32.totalorder %s20, 0
      %p41 = por %p39, %p40
      %p42 = scmp.ne.s32.totalorder %s28, %s29
      %p43 = scmp.eq.s32.totalorder %s21, 1
      %p44 = por %p42, %p43
      %p46 = scmp.ne.s32.totalorder %s29, %s45
      %p47 = scmp.eq.s32.totalorder %s21, 0
      %p48 = por %p46, %p47
      %s50 = sadd.s32 %s49, 1
      %p53 = scmp.eq.s32.totalorder %s15, 1
      %p54 = scmp.ne.s32.totalorder %s49, %s51
      %p55 = scmp.eq.s32.totalorder %s15, 0
      %p56 = por %p54, %p55
      %p57 = scmp.ne.s32.totalorder %s49, %s51
      %p58 = scmp.eq.s32.totalorder %s20, 1
      %p59 = por %p57, %p58
      %p60 = scmp.ne.s32.totalorder %s51, %s52
      %p61 = scmp.eq.s32.totalorder %s20, 0
      %p62 = por %p60, %p61
      %p63 = scmp.ne.s32.totalorder %s51, %s52
      %p64 = scmp.eq.s32.totalorder %s21, 1
      %p65 = por %p63, %p64
      %p67 = scmp.ne.s32.totalorder %s52, %s66
      %p68 = scmp.eq.s32.totalorder %s21, 0
      %p69 = por %p67, %p68
      %s71 = sadd.s32 %s70, 1
      %p74 = scmp.eq.s32.totalorder %s15, 1
      %p75 = scmp.ne.s32.totalorder %s70, %s72
      %p76 = scmp.eq.s32.totalorder %s15, 0
      %p77 = por %p75, %p76
      %p78 = scmp.ne.s32.totalorder %s70, %s72
      %p79 = scmp.eq.s32.totalorder %s20, 1
      %p80 = por %p78, %p79
      %p81 = scmp.ne.s32.totalorder %s72, %s73
      %p82 = scmp.eq.s32.totalorder %s20, 0
      %p83 = por %p81, %p82
      %p84 = scmp.ne.s32.totalorder %s72, %s73
      %p85 = scmp.eq.s32.totalorder %s21, 1
      %p86 = por %p84, %p85
      %p88 = scmp.ne.s32.totalorder %s73, %s87
      %p89 = scmp.eq.s32.totalorder %s21, 0
      %p90 = por %p88, %p89
      %s91 = ssub.s32 %s15, %s22
      %p92 = scmp.eq.s32.totalorder %s91, 0
      %s94 = sadd.s32 %s93, 1
      %s95 = scalar_select %p92, %s93, %s94
      %p98 = pneg %p92
      %p99 = scmp.eq.s32.totalorder %s15, 1
      %p100 = por %p98, %p99
      %p101 = scmp.ne.s32.totalorder %s93, %s96
      %p102 = scmp.eq.s32.totalorder %s15, 0
      %p103 = por %p101, %p102
      %p104 = scmp.ne.s32.totalorder %s93, %s96
      %p105 = scmp.eq.s32.totalorder %s20, 1
      %p106 = por %p104, %p105
      %p107 = scmp.ne.s32.totalorder %s96, %s97
      %p108 = scmp.eq.s32.totalorder %s20, 0
      %p109 = por %p107, %p108
      %p110 = scmp.ne.s32.totalorder %s96, %s97
      %p111 = scmp.eq.s32.totalorder %s21, 1
      %p112 = por %p110, %p111
      %p114 = scmp.ne.s32.totalorder %s97, %s113
      %p115 = scmp.eq.s32.totalorder %s21, 0
      %p116 = por %p114, %p115
      %p117 = scmp.le.s32.totalorder 1, %s15
      %p118 = scmp.lt.s32.totalorder %s15, 3
      %p119 = pnand %p117, %p118
      %p120 = pneg %p119
      // Predicated region
      $region9: #{tpu_custom_call.1} parent=5 // pred_check
        _
      $region10: #{tpu_custom_call.1} parent=5 // pred_check_branch
        %122 = sbr.rel (%p119) target = $region12
      $region11: #{tpu_custom_call.1} parent=5 // pred_region
        %s123 = ssub.s32 %s15, 1
        // Predicated region
        $region13: #{tpu_custom_call.1} parent=11 // pred_check
          %p124 = pneg %p62
        $region14: #{tpu_custom_call.1} parent=11 // pred_check_branch
          %126 = sbr.rel (%p124) target = $region16
        $region15: #{tpu_custom_call.1} parent=11 // pred_region
          _
        $region16: #{tpu_custom_call.1} parent=11 // pred_fallthru
          _
        // Predicated region
        $region17: #{tpu_custom_call.1} parent=11 // pred_check
          %p127 = pneg %p83
        $region18: #{tpu_custom_call.1} parent=11 // pred_check_branch
          %129 = sbr.rel (%p127) target = $region20
        $region19: #{tpu_custom_call.1} parent=11 // pred_region
          _
        $region20: #{tpu_custom_call.1} parent=11 // pred_fallthru
          _
      $region12: #{tpu_custom_call.1} parent=5 // pred_fallthru
        _
      %p130 = scmp.lt.s32.totalorder %s15, 2
      // Predicated region
      $region21: #{tpu_custom_call.1} parent=5 // pred_check
        %p131 = pneg %p130
      $region22: #{tpu_custom_call.1} parent=5 // pred_check_branch
        %133 = sbr.rel (%p131) target = $region24
      $region23: #{tpu_custom_call.1} parent=5 // pred_region
        // Predicated region
        $region25: #{tpu_custom_call.1} parent=23 // pred_check
          %p134 = pneg %p35
        $region26: #{tpu_custom_call.1} parent=23 // pred_check_branch
          %136 = sbr.rel (%p134) target = $region28
        $region27: #{tpu_custom_call.1} parent=23 // pred_region
          %s137 = sand.u32 %s25, 1
          %s138 = scalar_lea.sflag [#allocation4], %s137
          %s139 = sand.u32 %s25, 1
          %s140 = smul.addr %s139, 24
          %s141 = scalar_lea.vmem [#allocation3], %s140
          %s143 = ssub.s32 384, 384
          %144 = vsyncadd %s138, %s143
          %s145 = smul.addr %s15, 3
          %s146 = smul.addr %s145, 128
          %s147 = scalar_lea.hbm %s0, %s146
          %s149 = sshll.u32 %s141, 4
          %s150 = int_to_ptr.vmem [resolvable:$true] %s149
          %152 = dma.hbm_to_vmem [thread:$0]  %s147, 384, %s150, %s138
        $region28: #{tpu_custom_call.1} parent=23 // pred_fallthru
          _
      $region24: #{tpu_custom_call.1} parent=5 // pred_fallthru
        _
      %p153 = scmp.le.s32.totalorder 1, %s15
      %p154 = scmp.lt.s32.totalorder %s15, 3
      %p155 = pnand %p153, %p154
      %p156 = pneg %p155
      // Predicated region
      $region29: #{tpu_custom_call.1} parent=5 // pred_check
        _
      $region30: #{tpu_custom_call.1} parent=5 // pred_check_branch
        %158 = sbr.rel (%p155) target = $region32
      $region31: #{tpu_custom_call.1} parent=5 // pred_region
        %s159 = ssub.s32 %s15, 1
        %s160 = sand.u32 %s28, 1
        %s161 = scalar_lea.sflag [#allocation4], %s160
        %s162 = sand.u32 %s28, 1
        %s163 = smul.addr %s162, 24
        %s164 = scalar_lea.vmem [#allocation3], %s163
        // Predicated region
        $region33: #{tpu_custom_call.1} parent=31 // pred_check
          %p165 = pneg %p41
        $region34: #{tpu_custom_call.1} parent=31 // pred_check_branch
          %167 = sbr.rel (%p165) target = $region36
        $region35: #{tpu_custom_call.1} parent=31 // pred_region
          %168 = dma.done %s161, 384
        $region36: #{tpu_custom_call.1} parent=31 // pred_fallthru
          _
        %s169 = sand.u32 %s28, 1
        %s170 = scalar_lea.sflag [#allocation4], %s169
        %s171 = sand.u32 %s28, 1
        %s172 = smul.addr %s171, 24
        %s173 = scalar_lea.vmem [#allocation3], %s172
        %p174 = pneg %p41
        %p175 = pneg %p38
        %p176 = pneg %p62
        %p177 = pneg %p59
        %p178 = pneg %p83
        %p179 = pneg %p80
        %p180 = pneg %p109
        %p181 = pneg %p106
        %s182 = sand.u32 %s96, 1
        %s183 = scalar_lea.sflag [#allocation5], %s182
        %s184 = sand.u32 %s96, 1
        %s185 = smul.addr %s184, 24
        %s186 = scalar_lea.vmem [#allocation6], %s185
        %p187 = scmp.eq.s32.totalorder %s20, 0
        // Predicated region
        $region37: #{tpu_custom_call.1} parent=31 // pred_check
          %p188 = pneg %p187
        $region38: #{tpu_custom_call.1} parent=31 // pred_check_branch
          %190 = sbr.rel (%p188) target = $region40
        $region39: #{tpu_custom_call.1} parent=31 // pred_region
          %191 = vst [vmem:[#allocation2] sm:$0xff] 0.0
          %192 = vst [vmem:[#allocation2 + $0x8] sm:$0xff] 0.0
          %193 = vst [vmem:[#allocation2 + $0x10] sm:$0xff] 0.0
          %194 = vst [vmem:[#allocation2 + $0x18] sm:$0xff] 0.0
          %195 = vst [vmem:[#allocation2 + $0x20] sm:$0xff] 0.0
          %196 = vst [vmem:[#allocation2 + $0x28] sm:$0xff] 0.0
          %197 = vst [vmem:[#allocation2 + $0x30] sm:$0xff] 0.0
          %198 = vst [vmem:[#allocation2 + $0x38] sm:$0xff] 0.0
          %199 = vst [vmem:[#allocation2 + $0x40] sm:$0xff] 0.0
          %200 = vst [vmem:[#allocation2 + $0x48] sm:$0xff] 0.0
          %201 = vst [vmem:[#allocation2 + $0x50] sm:$0xff] 0.0
          %202 = vst [vmem:[#allocation2 + $0x58] sm:$0xff] 0.0
          %203 = vst [vmem:[#allocation2 + $0x60] sm:$0xff] 0.0
          %204 = vst [vmem:[#allocation2 + $0x68] sm:$0xff] 0.0
          %205 = vst [vmem:[#allocation2 + $0x70] sm:$0xff] 0.0
          %206 = vst [vmem:[#allocation2 + $0x78] sm:$0xff] 0.0
          %207 = vst [vmem:[#allocation2 + $0x80] sm:$0xff] 0.0
          %208 = vst [vmem:[#allocation2 + $0x88] sm:$0xff] 0.0
          %209 = vst [vmem:[#allocation2 + $0x90] sm:$0xff] 0.0
          %210 = vst [vmem:[#allocation2 + $0x98] sm:$0xff] 0.0
          %211 = vst [vmem:[#allocation2 + $0xa0] sm:$0xff] 0.0
          %212 = vst [vmem:[#allocation2 + $0xa8] sm:$0xff] 0.0
          %213 = vst [vmem:[#allocation2 + $0xb0] sm:$0xff] 0.0
          %214 = vst [vmem:[#allocation2 + $0xb8] sm:$0xff] 0.0
          %215 = vst [vmem:[#allocation2 + $0xc0] sm:$0xff] 0.0
          %216 = vst [vmem:[#allocation2 + $0xc8] sm:$0xff] 0.0
          %217 = vst [vmem:[#allocation2 + $0xd0] sm:$0xff] 0.0
        $region40: #{tpu_custom_call.1} parent=31 // pred_fallthru
          _
        %v218 = vld [vmem:[%s164] sm:$0xff]
        %v219 = vld [vmem:[%s164 + $0x8] sm:$0xff]
        %v220 = vld [vmem:[%s164 + $0x10] sm:$0xff]
        %221 = vst [vmem:[#allocation2] sm:$0xff] %v218
        %222 = vst [vmem:[#allocation2 + $0x8] sm:$0xff] %v219
        %223 = vst [vmem:[#allocation2 + $0x10] sm:$0xff] %v220
        %v224 = vld [vmem:[%s164] sm:$0xff]
        %v225 = vld [vmem:[%s164 + $0x8] sm:$0xff]
        %v226 = vld [vmem:[%s164 + $0x10] sm:$0xff]
        %230 = vrot.lane.b32.xlu0 %v224, 127
        %v231 = vpop.permute.xlu0 %230
        %232 = vrot.lane.b32.xlu0 %v225, 127
        %v233 = vpop.permute.xlu0 %232
        %234 = vrot.lane.b32.xlu0 %v226, 127
        %v235 = vpop.permute.xlu0 %234
        %vm236 = vcmask 1039360
        %v237 = vsel %vm236, %v231, %v233
        %v238 = vsel %vm236, %v233, %v235
        %242 = vst [vmem:[#allocation2 + $0x18] sm:$0xff] %v237
        %243 = vst [vmem:[#allocation2 + $0x20] sm:$0xff] %v238
        %244 = vst.msk [vmem:[#allocation2 + $0x28] sm:$0xff] %vm236, %v235
        %v245 = vld [vmem:[%s164] sm:$0xff]
        %v246 = vld [vmem:[%s164 + $0x8] sm:$0xff]
        %v247 = vld [vmem:[%s164 + $0x10] sm:$0xff]
        %251 = vrot.lane.b32.xlu0 %v245, 126
        %v252 = vpop.permute.xlu0 %251
        %253 = vrot.lane.b32.xlu0 %v246, 126
        %v254 = vpop.permute.xlu0 %253
        %255 = vrot.lane.b32.xlu0 %v247, 126
        %v256 = vpop.permute.xlu0 %255
        %vm257 = vcmask 1031168
        %v258 = vsel %vm257, %v252, %v254
        %v259 = vsel %vm257, %v254, %v256
        %263 = vst [vmem:[#allocation2 + $0x30] sm:$0xff] %v258
        %264 = vst [vmem:[#allocation2 + $0x38] sm:$0xff] %v259
        %265 = vst.msk [vmem:[#allocation2 + $0x40] sm:$0xff] %vm257, %v256
        %v266 = vld [vmem:[%s164] sm:$0xff]
        %v267 = vld [vmem:[%s164 + $0x8] sm:$0xff]
        %v268 = vld [vmem:[%s164 + $0x10] sm:$0xff]
        %272 = vrot.lane.b32.xlu0 %v266, 110
        %v273 = vpop.permute.xlu0 %272
        %274 = vrot.lane.b32.xlu0 %v267, 110
        %v275 = vpop.permute.xlu0 %274
        %276 = vrot.lane.b32.xlu0 %v268, 110
        %v277 = vpop.permute.xlu0 %276
        %vm278 = vcmask 900096
        %v279 = vsel %vm278, %v273, %v275
        %v280 = vsel %vm278, %v275, %v277
        %284 = vst [vmem:[#allocation2 + $0x48] sm:$0xff] %v279
        %285 = vst [vmem:[#allocation2 + $0x50] sm:$0xff] %v280
        %286 = vst.msk [vmem:[#allocation2 + $0x58] sm:$0xff] %vm278, %v277
        %v287 = vld [vmem:[%s164] sm:$0xff]
        %v288 = vld [vmem:[%s164 + $0x8] sm:$0xff]
        %v289 = vld [vmem:[%s164 + $0x10] sm:$0xff]
        %293 = vrot.lane.b32.xlu0 %v287, 109
        %v294 = vpop.permute.xlu0 %293
        %295 = vrot.lane.b32.xlu0 %v288, 109
        %v296 = vpop.permute.xlu0 %295
        %297 = vrot.lane.b32.xlu0 %v289, 109
        %v298 = vpop.permute.xlu0 %297
        %vm299 = vcmask 891904
        %v300 = vsel %vm299, %v294, %v296
        %v301 = vsel %vm299, %v296, %v298
        %305 = vst [vmem:[#allocation2 + $0x60] sm:$0xff] %v300
        %306 = vst [vmem:[#allocation2 + $0x68] sm:$0xff] %v301
        %307 = vst.msk [vmem:[#allocation2 + $0x70] sm:$0xff] %vm299, %v298
        %v308 = vld [vmem:[%s164] sm:$0xff]
        %v309 = vld [vmem:[%s164 + $0x8] sm:$0xff]
        %v310 = vld [vmem:[%s164 + $0x10] sm:$0xff]
        %314 = vrot.lane.b32.xlu0 %v308, 108
        %v315 = vpop.permute.xlu0 %314
        %316 = vrot.lane.b32.xlu0 %v309, 108
        %v317 = vpop.permute.xlu0 %316
        %318 = vrot.lane.b32.xlu0 %v310, 108
        %v319 = vpop.permute.xlu0 %318
        %vm320 = vcmask 883712
        %v321 = vsel %vm320, %v315, %v317
        %v322 = vsel %vm320, %v317, %v319
        %326 = vst [vmem:[#allocation2 + $0x78] sm:$0xff] %v321
        %327 = vst [vmem:[#allocation2 + $0x80] sm:$0xff] %v322
        %328 = vst.msk [vmem:[#allocation2 + $0x88] sm:$0xff] %vm320, %v319
        %v329 = vld [vmem:[%s164] sm:$0xff]
        %v330 = vld [vmem:[%s164 + $0x8] sm:$0xff]
        %v331 = vld [vmem:[%s164 + $0x10] sm:$0xff]
        %335 = vrot.lane.b32.xlu0 %v329, 92
        %v336 = vpop.permute.xlu0 %335
        %337 = vrot.lane.b32.xlu0 %v330, 92
        %v338 = vpop.permute.xlu0 %337
        %339 = vrot.lane.b32.xlu0 %v331, 92
        %v340 = vpop.permute.xlu0 %339
        %vm341 = vcmask 752640
        %v342 = vsel %vm341, %v336, %v338
        %v343 = vsel %vm341, %v338, %v340
        %347 = vst [vmem:[#allocation2 + $0x90] sm:$0xff] %v342
        %348 = vst [vmem:[#allocation2 + $0x98] sm:$0xff] %v343
        %349 = vst.msk [vmem:[#allocation2 + $0xa0] sm:$0xff] %vm341, %v340
        %v350 = vld [vmem:[%s164] sm:$0xff]
        %v351 = vld [vmem:[%s164 + $0x8] sm:$0xff]
        %v352 = vld [vmem:[%s164 + $0x10] sm:$0xff]
        %356 = vrot.lane.b32.xlu0 %v350, 91
        %v357 = vpop.permute.xlu0 %356
        %358 = vrot.lane.b32.xlu0 %v351, 91
        %v359 = vpop.permute.xlu0 %358
        %360 = vrot.lane.b32.xlu0 %v352, 91
        %v361 = vpop.permute.xlu0 %360
        %vm362 = vcmask 744448
        %v363 = vsel %vm362, %v357, %v359
        %v364 = vsel %vm362, %v359, %v361
        %368 = vst [vmem:[#allocation2 + $0xa8] sm:$0xff] %v363
        %369 = vst [vmem:[#allocation2 + $0xb0] sm:$0xff] %v364
        %370 = vst.msk [vmem:[#allocation2 + $0xb8] sm:$0xff] %vm362, %v361
        %v371 = vld [vmem:[%s164] sm:$0xff]
        %v372 = vld [vmem:[%s164 + $0x8] sm:$0xff]
        %v373 = vld [vmem:[%s164 + $0x10] sm:$0xff]
        %377 = vrot.lane.b32.xlu0 %v371, 90
        %v378 = vpop.permute.xlu0 %377
        %379 = vrot.lane.b32.xlu0 %v372, 90
        %v380 = vpop.permute.xlu0 %379
        %381 = vrot.lane.b32.xlu0 %v373, 90
        %v382 = vpop.permute.xlu0 %381
        %vm383 = vcmask 736256
        %v384 = vsel %vm383, %v378, %v380
        %v385 = vsel %vm383, %v380, %v382
        %389 = vst [vmem:[#allocation2 + $0xc0] sm:$0xff] %v384
        %390 = vst [vmem:[#allocation2 + $0xc8] sm:$0xff] %v385
        %391 = vst.msk [vmem:[#allocation2 + $0xd0] sm:$0xff] %vm383, %v382
        %v392 = vld [vmem:[%s1] sm:$0xff]
        %v393 = vld [vmem:[#allocation2] sm:$0xff]
        %v394 = vld [vmem:[#allocation2 + $0x8] sm:$0xff]
        %v395 = vld [vmem:[#allocation2 + $0x10] sm:$0xff]
        %v396 = vld [vmem:[#allocation2 + $0x18] sm:$0xff]
        %v397 = vld [vmem:[#allocation2 + $0x20] sm:$0xff]
        %v398 = vld [vmem:[#allocation2 + $0x28] sm:$0xff]
        %v399 = vld [vmem:[#allocation2 + $0x30] sm:$0xff]
        %v400 = vld [vmem:[#allocation2 + $0x38] sm:$0xff]
        %v401 = vld [vmem:[#allocation2 + $0x40] sm:$0xff]
        %v402 = vld [vmem:[#allocation2 + $0x48] sm:$0xff]
        %v403 = vld [vmem:[#allocation2 + $0x50] sm:$0xff]
        %v404 = vld [vmem:[#allocation2 + $0x58] sm:$0xff]
        %v405 = vld [vmem:[#allocation2 + $0x60] sm:$0xff]
        %v406 = vld [vmem:[#allocation2 + $0x68] sm:$0xff]
        %v407 = vld [vmem:[#allocation2 + $0x70] sm:$0xff]
        %v408 = vld [vmem:[#allocation2 + $0x78] sm:$0xff]
        %v409 = vld [vmem:[#allocation2 + $0x80] sm:$0xff]
        %v410 = vld [vmem:[#allocation2 + $0x88] sm:$0xff]
        %v411 = vld [vmem:[#allocation2 + $0x90] sm:$0xff]
        %v412 = vld [vmem:[#allocation2 + $0x98] sm:$0xff]
        %v413 = vld [vmem:[#allocation2 + $0xa0] sm:$0xff]
        %v414 = vld [vmem:[#allocation2 + $0xa8] sm:$0xff]
        %v415 = vld [vmem:[#allocation2 + $0xb0] sm:$0xff]
        %v416 = vld [vmem:[#allocation2 + $0xb8] sm:$0xff]
        %v417 = vld [vmem:[#allocation2 + $0xc0] sm:$0xff]
        %v418 = vld [vmem:[#allocation2 + $0xc8] sm:$0xff]
        %v419 = vld [vmem:[#allocation2 + $0xd0] sm:$0xff]
        %v420 = vld [vmem:[%s2] sm:$0xff]
        %422 = vset.pattern.permute.xlu0 0
        %423 = vperm.xlu0 %422, %v420
        %v424 = vpop.permute.xlu0 %423
        %vm426 = vcmask 588800
        %v428 = vsel %vm426, %v392, 0
        %430 = vmatprep.subr.mxu0 0.0
        %431 = vmatpush1.msra.mxu0 0.0
        %432 = vmatprep.subr.mxu0 0.0
        %433 = vmatpush1.msra.mxu0 0.0
        %434 = vmatprep.subr.mxu0 0.0
        %435 = vmatpush1.msra.mxu0 0.0
        %436 = vmatprep.subr.mxu0 0.0
        %437 = vmatpush1.msra.mxu0 0.0
        %438 = vmatprep.subr.mxu0 0.0
        %439 = vmatpush1.msra.mxu0 0.0
        %440 = vmatprep.subr.mxu0 0.0
        %441 = vmatpush1.msra.mxu0 0.0
        %442 = vmatprep.subr.mxu0 0.0
        %443 = vmatpush1.msra.mxu0 0.0
        %444 = vmatprep.subr.mxu0 %v418
        %445 = vmatpush1.msra.mxu0 %v417
        %446 = vmatprep.subr.mxu0 %v415
        %447 = vmatpush1.msra.mxu0 %v414
        %448 = vmatprep.subr.mxu0 %v412
        %449 = vmatpush1.msra.mxu0 %v411
        %450 = vmatprep.subr.mxu0 %v409
        %451 = vmatpush1.msra.mxu0 %v408
        %452 = vmatprep.subr.mxu0 %v406
        %453 = vmatpush1.msra.mxu0 %v405
        %454 = vmatprep.subr.mxu0 %v403
        %455 = vmatpush1.msra.mxu0 %v402
        %456 = vmatprep.subr.mxu0 %v400
        %457 = vmatpush1.msra.mxu0 %v399
        %458 = vmatprep.subr.mxu0 %v397
        %459 = vmatpush1.msra.mxu0 %v396
        %460 = vmatprep.subr.mxu0 %v394
        %461 = vmatpush1.msra.mxu0 %v393
        %462 = vmatprep.subr.mxu0 0.0
        %463 = vmatpush2.msra.mxu0 0.0
        %464 = vmatprep.subr.mxu0 0.0
        %465 = vmatpush2.msra.mxu0 0.0
        %466 = vmatprep.subr.mxu0 0.0
        %467 = vmatpush2.msra.mxu0 0.0
        %468 = vmatprep.subr.mxu0 0.0
        %469 = vmatpush2.msra.mxu0 0.0
        %470 = vmatprep.subr.mxu0 0.0
        %471 = vmatpush2.msra.mxu0 0.0
        %472 = vmatprep.subr.mxu0 0.0
        %473 = vmatpush2.msra.mxu0 0.0
        %474 = vmatprep.subr.mxu0 0.0
        %475 = vmatpush2.msra.mxu0 0.0
        %476 = vmatprep.subr.mxu0 0.0
        %477 = vmatpush2.msra.mxu0 0.0
        %478 = vmatprep.subr.mxu0 0.0
        %479 = vmatpush2.msra.mxu0 0.0
        %480 = vmatprep.subr.mxu0 0.0
        %481 = vmatpush2.msra.mxu0 0.0
        %482 = vmatprep.subr.mxu0 0.0
        %483 = vmatpush2.msra.mxu0 0.0
        %484 = vmatprep.subr.mxu0 0.0
        %485 = vmatpush2.msra.mxu0 0.0
        %486 = vmatprep.subr.mxu0 0.0
        %487 = vmatpush2.msra.mxu0 0.0
        %488 = vmatprep.subr.mxu0 0.0
        %489 = vmatpush2.msra.mxu0 0.0
        %490 = vmatprep.subr.mxu0 0.0
        %491 = vmatpush2.msra.mxu0 0.0
        %492 = vmatprep.subr.mxu0 0.0
        %493 = vmatpush2.msra.mxu0 0.0
        %494 = vmatprep.mubr.f32.mxu0 0.0
        %495 = vmatmul.mubr.f32.gmra.mxu0 %v428
        %v496 = vpop.f32.mrf.mxu0
        %v497 = vadd.f32 %v424, %v496
        %v498 = vpop.f32.mrf.mxu0
        %v499 = vadd.f32 %v424, %v498
        %500 = vdwg.mxu0
        %501 = vmatprep.subr.mxu0 0.0
        %502 = vmatpush1.msra.mxu0 0.0
        %503 = vmatprep.subr.mxu0 0.0
        %504 = vmatpush1.msra.mxu0 0.0
        %505 = vmatprep.subr.mxu0 0.0
        %506 = vmatpush1.msra.mxu0 0.0
        %507 = vmatprep.subr.mxu0 0.0
        %508 = vmatpush1.msra.mxu0 0.0
        %509 = vmatprep.subr.mxu0 0.0
        %510 = vmatpush1.msra.mxu0 0.0
        %511 = vmatprep.subr.mxu0 0.0
        %512 = vmatpush1.msra.mxu0 0.0
        %513 = vmatprep.subr.mxu0 0.0
        %514 = vmatpush1.msra.mxu0 0.0
        %515 = vmatprep.subr.mxu0 0.0
        %516 = vmatpush1.msra.mxu0 %v419
        %517 = vmatprep.subr.mxu0 0.0
        %518 = vmatpush1.msra.mxu0 %v416
        %519 = vmatprep.subr.mxu0 0.0
        %520 = vmatpush1.msra.mxu0 %v413
        %521 = vmatprep.subr.mxu0 0.0
        %522 = vmatpush1.msra.mxu0 %v410
        %523 = vmatprep.subr.mxu0 0.0
        %524 = vmatpush1.msra.mxu0 %v407
        %525 = vmatprep.subr.mxu0 0.0
        %526 = vmatpush1.msra.mxu0 %v404
        %527 = vmatprep.subr.mxu0 0.0
        %528 = vmatpush1.msra.mxu0 %v401
        %529 = vmatprep.subr.mxu0 0.0
        %530 = vmatpush1.msra.mxu0 %v398
        %531 = vmatprep.subr.mxu0 0.0
        %532 = vmatpush1.msra.mxu0 %v395
        %533 = vmatprep.subr.mxu0 0.0
        %534 = vmatpush2.msra.mxu0 0.0
        %535 = vmatprep.subr.mxu0 0.0
        %536 = vmatpush2.msra.mxu0 0.0
        %537 = vmatprep.subr.mxu0 0.0
        %538 = vmatpush2.msra.mxu0 0.0
        %539 = vmatprep.subr.mxu0 0.0
        %540 = vmatpush2.msra.mxu0 0.0
        %541 = vmatprep.subr.mxu0 0.0
        %542 = vmatpush2.msra.mxu0 0.0
        %543 = vmatprep.subr.mxu0 0.0
        %544 = vmatpush2.msra.mxu0 0.0
        %545 = vmatprep.subr.mxu0 0.0
        %546 = vmatpush2.msra.mxu0 0.0
        %547 = vmatprep.subr.mxu0 0.0
        %548 = vmatpush2.msra.mxu0 0.0
        %549 = vmatprep.subr.mxu0 0.0
        %550 = vmatpush2.msra.mxu0 0.0
        %551 = vmatprep.subr.mxu0 0.0
        %552 = vmatpush2.msra.mxu0 0.0
        %553 = vmatprep.subr.mxu0 0.0
        %554 = vmatpush2.msra.mxu0 0.0
        %555 = vmatprep.subr.mxu0 0.0
        %556 = vmatpush2.msra.mxu0 0.0
        %557 = vmatprep.subr.mxu0 0.0
        %558 = vmatpush2.msra.mxu0 0.0
        %559 = vmatprep.subr.mxu0 0.0
        %560 = vmatpush2.msra.mxu0 0.0
        %561 = vmatprep.subr.mxu0 0.0
        %562 = vmatpush2.msra.mxu0 0.0
        %563 = vmatprep.subr.mxu0 0.0
        %564 = vmatpush2.msra.mxu0 0.0
        %565 = vmatprep.mubr.f32.mxu0 0.0
        %566 = vmatmul.mubr.f32.gmra.mxu0 %v428
        %v567 = vpop.f32.mrf.mxu0
        %v568 = vadd.f32 %v424, %v567
        %v569 = vpop.f32.mrf.mxu0
        %570 = vdwg.mxu0
        %571 = vst [vmem:[%s186] sm:$0xff] %v497
        %572 = vst [vmem:[%s186 + $0x8] sm:$0xff] %v499
        %573 = vst [vmem:[%s186 + $0x10] sm:$0xff] %v568
        %s574 = sand.u32 %s96, 1
        %s575 = scalar_lea.sflag [#allocation5], %s574
        %s576 = sand.u32 %s96, 1
        %s577 = smul.addr %s576, 24
        %s578 = scalar_lea.vmem [#allocation6], %s577
        // Predicated region
        $region41: #{tpu_custom_call.1} parent=31 // pred_check
          %p579 = pneg %p106
        $region42: #{tpu_custom_call.1} parent=31 // pred_check_branch
          %581 = sbr.rel (%p579) target = $region44
        $region43: #{tpu_custom_call.1} parent=31 // pred_region
          %s583 = ssub.s32 384, 384
          %584 = vsyncadd %s575, %s583
          %s585 = smul.addr %s20, 3
          %s586 = smul.addr %s585, 128
          %s587 = scalar_lea.hbm %s3, %s586
          %s589 = sshll.u32 %s578, 4
          %s590 = int_to_ptr.vmem [resolvable:$true] %s589
          %592 = dma.vmem_to_hbm [thread:$0]  %s590, 384, %s587, %s575
        $region44: #{tpu_custom_call.1} parent=31 // pred_fallthru
          _
      $region32: #{tpu_custom_call.1} parent=5 // pred_fallthru
        _
      %p593 = scmp.le.s32.totalorder 2, %s15
      // Predicated region
      $region45: #{tpu_custom_call.1} parent=5 // pred_check
        %p594 = pneg %p593
      $region46: #{tpu_custom_call.1} parent=5 // pred_check_branch
        %596 = sbr.rel (%p594) target = $region48
      $region47: #{tpu_custom_call.1} parent=5 // pred_region
        %s597 = ssub.s32 %s15, 2
        // Predicated region
        $region49: #{tpu_custom_call.1} parent=47 // pred_check
          %p598 = pneg %p112
        $region50: #{tpu_custom_call.1} parent=47 // pred_check_branch
          %600 = sbr.rel (%p598) target = $region52
        $region51: #{tpu_custom_call.1} parent=47 // pred_region
          %s601 = sand.u32 %s97, 1
          %s602 = scalar_lea.sflag [#allocation5], %s601
          %s603 = sand.u32 %s97, 1
          %s604 = smul.addr %s603, 24
          %s605 = scalar_lea.vmem [#allocation6], %s604
          %606 = dma.done %s602, 384
        $region52: #{tpu_custom_call.1} parent=47 // pred_fallthru
          _
      $region48: #{tpu_custom_call.1} parent=5 // pred_fallthru
        _
    $region6: #{tpu_custom_call.1} parent=1 // loop_footer
      %s19 = sadd.s32 1, %s15
    $region7: #{tpu_custom_call.1} parent=1 // loop_footer_branch
      %14 = sbr.rel target = $region3
    $region8: #{tpu_custom_call.1} parent=1 // loop_exit
      _
    %607 = vsyncpa [#allocation4], 1
    %s608 = scalar_lea.sflag [#allocation4], 1
    %609 = vsyncpa %s608, 1
    %610 = vsyncpa [#allocation5], 1
    %s611 = scalar_lea.sflag [#allocation5], 1
    %612 = vsyncpa %s611, 1

</llo_original>
